<compile_context>
chip_gen: v7x
topology: tpu7x:2x2x1
jax: 0.10.0
libtpu: 0.0.40
codegen_flags: <defaults>
</compile_context>

<pallas_src>
import math
import jax
import jax.numpy as jnp
from jax.experimental import pallas as pl
from jax.experimental.pallas import tpu as pltpu

BN_EPS = 1e-5
LANE = 128


# ----------------------------------------------------------------------------
# Small wrapper-side helpers (padding / BN folding are layout plumbing, not compute).
# ----------------------------------------------------------------------------
def _round_up(n, m):
    return ((n + m - 1) // m) * m


def _pad_to(x, size, axis):
    pad = size - x.shape[axis]
    if pad <= 0:
        return x
    widths = [(0, 0)] * x.ndim
    widths[axis] = (0, pad)
    return jnp.pad(x, widths)


def _fold_bn(w, b, gamma, beta, mean, var):
    # y = BN(x @ W + b)  ==  x @ (W*s) + ((b - mean)*s + beta),  s = gamma / sqrt(var+eps)
    scale = gamma * jax.lax.rsqrt(var + BN_EPS)          # (1, out)
    return w * scale, (b - mean) * scale + beta


def _pick_batch_tile(B, S, C):
    # VMEM budget per grid step for the image tile: bf16 input (double buffered) plus the
    # f32 intermediates the VPU path materializes  ~= S*C*(2*2 + 4 + 4) bytes per batch row.
    per_row = S * C * 12
    budget = 20 * 1024 * 1024                            # well under the 32 MiB scoped default
    tb = budget // max(per_row, 1)
    tb = max(8, min(64, (tb // 8) * 8))                  # multiple of 8 sublanes, cap at 64
    return int(min(tb, _round_up(B, 8)))


# ----------------------------------------------------------------------------
# Fused kernel: gene MLP (BN folded) + image head (ReLU6 -> avg pool -> fc).
# ----------------------------------------------------------------------------
def _igc_kernel(gene_ref, w1_ref, b1_ref, w2_ref, b2_ref, w3_ref, b3_ref,
                img_ref, fcw_ref, fcb_ref,
                img_out_ref, gene_out_ref):
    # ---- gene branch: [Linear(+folded BN) -> ReLU6] x2 -> Linear ----
    h = gene_ref[...]                                                    # (TB, 128)
    h = jnp.dot(h, w1_ref[...], preferred_element_type=jnp.float32) + b1_ref[...]
    h = jnp.clip(h, 0.0, 6.0)                                            # ReLU6
    h = jnp.dot(h, w2_ref[...], preferred_element_type=jnp.float32) + b2_ref[...]
    h = jnp.clip(h, 0.0, 6.0)
    gene_out_ref[...] = (jnp.dot(h, w3_ref[...], preferred_element_type=jnp.float32)
                         + b3_ref[...])                                  # (TB, 128) lane-dense

    # ---- image head: ReLU6 -> global average pool -> fc ----
    f = img_ref[...]                                                     # (TB, S, C) channels-last bf16
    f = jnp.clip(f, 0.0, 6.0)                                            # exact in bf16 (0,6 representable)
    pooled = jnp.mean(f.astype(jnp.float32), axis=1)                     # sublane reduce -> (TB, C) f32
    img_out_ref[...] = (jnp.dot(pooled, fcw_ref[...], preferred_element_type=jnp.float32)
                        + fcb_ref[...])                                  # (TB, 128) lane-dense


# ----------------------------------------------------------------------------
# IGCNet.forward
# ----------------------------------------------------------------------------
def igcnet_forward(data, params, *, batch_tile=None):
    gene = data["gene"].astype(jnp.float32)              # (B, n_genes)
    feat = data["image"]                                  # backbone feature map, NCHW
    B, C, H, W = feat.shape
    S = H * W
    n_out = params["n_out"]

    # Channels-last + bf16 for the (mem-bound) HBM->VMEM transfer of the feature map.
    feat_slc = jnp.transpose(feat.reshape(B, C, S), (0, 2, 1)).astype(jnp.bfloat16)

    # Fold BN into the first two linears, then zero-pad everything lane-dense (x128).
    gp = params["gene"]
    w1, b1 = _fold_bn(gp["w1"], gp["b1"], gp["g1"], gp["be1"], gp["m1"], gp["v1"])
    w2, b2 = _fold_bn(gp["w2"], gp["b2"], gp["g2"], gp["be2"], gp["m2"], gp["v2"])
    w3, b3 = gp["w3"], gp["b3"]

    k0 = _round_up(gene.shape[1], LANE)                   # n_genes  -> 128
    h1 = _round_up(w1.shape[1], LANE)                     # hidden1  -> 128
    h2 = _round_up(w2.shape[1], LANE)                     # hidden2  -> 128
    no = _round_up(n_out, LANE)                           # n_out    -> 128

    w1p = _pad_to(_pad_to(w1, k0, 0), h1, 1); b1p = _pad_to(b1, h1, 1)
    w2p = _pad_to(_pad_to(w2, h1, 0), h2, 1); b2p = _pad_to(b2, h2, 1)
    w3p = _pad_to(_pad_to(w3, h2, 0), no, 1); b3p = _pad_to(b3, no, 1)
    fcwp = _pad_to(params["fc_w"], no, 1);    fcbp = _pad_to(params["fc_b"], no, 1)

    # Batch tile: both branches are batch-parallel, so one grid axis tiles everything.
    tb = batch_tile if batch_tile is not None else _pick_batch_tile(B, S, C)
    Bp = _round_up(B, tb)                                 # pad batch -> no divisibility assert
    gene_p = _pad_to(_pad_to(gene, k0, 1), Bp, 0)
    feat_p = _pad_to(feat_slc, Bp, 0)
    grid = (Bp // tb,)

    def rep(shape):                                       # weight replicated across grid steps
        nd = len(shape)
        return pl.BlockSpec(shape, lambda i: (0,) * nd)

    in_specs = [
        pl.BlockSpec((tb, k0), lambda i: (i, 0)),         # gene features
        rep(w1p.shape), rep(b1p.shape),
        rep(w2p.shape), rep(b2p.shape),
        rep(w3p.shape), rep(b3p.shape),
        pl.BlockSpec((tb, S, C), lambda i: (i, 0, 0)),    # image feature map (channels-last)
        rep(fcwp.shape), rep(fcbp.shape),
    ]
    out_specs = [pl.BlockSpec((tb, no), lambda i: (i, 0)),
                 pl.BlockSpec((tb, no), lambda i: (i, 0))]
    out_shape = [jax.ShapeDtypeStruct((Bp, no), jnp.float32),
                 jax.ShapeDtypeStruct((Bp, no), jnp.float32)]

    flops = 2 * Bp * (k0 * h1 + h1 * h2 + h2 * no + C * no) + 2 * Bp * S * C
    bytes_accessed = (feat_p.size * 2
                      + 4 * (gene_p.size + w1p.size + b1p.size + w2p.size + b2p.size
                             + w3p.size + b3p.size + fcwp.size + fcbp.size + 2 * Bp * no))

    img_out, gene_out = pl.pallas_call(
        _igc_kernel,
        grid=grid,
        in_specs=in_specs,
        out_specs=out_specs,
        out_shape=out_shape,
        compiler_params=pltpu.CompilerParams(
            dimension_semantics=("parallel",)),
        cost_estimate=pl.CostEstimate(flops=flops, transcendentals=0,
                                      bytes_accessed=bytes_accessed),
    )(gene_p, w1p, b1p, w2p, b2p, w3p, b3p, feat_p, fcwp, fcbp)

    # Slice the lane-dense (x128) / batch-padded outputs back in the wrapper (cheap).
    return img_out[:B, :n_out], gene_out[:B, :n_out]


# ----------------------------------------------------------------------------
# Deterministic parameter init (nn.Linear default init; BN uses trained-style eval stats).
# Linear weights are stored transposed as (in, out) so kernels compute x @ W + b.
# ----------------------------------------------------------------------------
def _linear_params(key, fan_in, fan_out):
    k1, k2 = jax.random.split(key)
    bound = 1.0 / math.sqrt(fan_in)
    w = jax.random.uniform(k1, (fan_in, fan_out), jnp.float32, -bound, bound)
    b = jax.random.uniform(k2, (1, fan_out), jnp.float32, -bound, bound)
    return w, b


def _bn_params(key, dim):
    # Non-trivial eval-mode statistics so the BN folding is actually exercised.
    k1, k2, k3, k4 = jax.random.split(key, 4)
    gamma = jax.random.uniform(k1, (1, dim), jnp.float32, 0.5, 1.5)
    beta = jax.random.uniform(k2, (1, dim), jnp.float32, -0.5, 0.5)
    mean = 0.1 * jax.random.normal(k3, (1, dim), jnp.float32)
    var = jax.random.uniform(k4, (1, dim), jnp.float32, 0.5, 1.5)
    return gamma, beta, mean, var


# ----------------------------------------------------------------------------
# Pure-JAX reference (same bf16 feature-map cast so inputs are bit-identical).
# ----------------------------------------------------------------------------
def _reference(data, params):
    feat = data["image"]
    B, C, H, W = feat.shape
    f = jnp.transpose(feat.reshape(B, C, H * W), (0, 2, 1))
    f = f.astype(jnp.bfloat16).astype(jnp.float32)
    f = jnp.clip(f, 0.0, 6.0)
    f_image = f.mean(axis=1) @ params["fc_w"] + params["fc_b"]

    p = params["gene"]
    h = data["gene"]
    for i in (1, 2):
        h = h @ p[f"w{i}"] + p[f"b{i}"]
        h = (h - p[f"m{i}"]) * jax.lax.rsqrt(p[f"v{i}"] + BN_EPS) * p[f"g{i}"] + p[f"be{i}"]
        h = jnp.clip(h, 0.0, 6.0)
    f_gene = h @ p["w3"] + p["b3"]
    return f_image, f_gene


if __name__ == "__main__":
    key = jax.random.PRNGKey(0)

    # Small shapes consistent with the module.
    B = 8
    n_genes = 32
    n_out_features = 16
    genenet = [100, 100]
    C_feat, H_feat, W_feat = 64, 8, 8   # stand-in for resnet101's (2048, 7, 7) feature map

    ks = jax.random.split(key, 10)

    # Gene MLP parameters.
    w1, b1 = _linear_params(ks[0], n_genes, genenet[0])
    g1, be1, m1, v1 = _bn_params(ks[1], genenet[0])
    w2, b2 = _linear_params(ks[2], genenet[0], genenet[1])
    g2, be2, m2, v2 = _bn_params(ks[3], genenet[1])
    w3, b3 = _linear_params(ks[4], genenet[1], n_out_features)
    gene_params = dict(w1=w1, b1=b1, g1=g1, be1=be1, m1=m1, v1=v1,
                       w2=w2, b2=b2, g2=g2, be2=be2, m2=m2, v2=v2,
                       w3=w3, b3=b3)

    # New image-branch fc (replaces self.imagenet.fc).
    fc_w, fc_b = _linear_params(ks[5], C_feat, n_out_features)

    params = {"gene": gene_params, "fc_w": fc_w, "fc_b": fc_b, "n_out": n_out_features}

    # Example inputs. data['image'] = backbone feature map (see TODO at top),
    # data['gene'] = genetic feature vector.
    data = {
        "image": jax.random.normal(ks[6], (B, C_feat, H_feat, W_feat), jnp.float32) * 2.0,
        "gene": jax.random.normal(ks[7], (B, n_genes), jnp.float32),
    }

    f_image, f_gene = igcnet_forward(data, params)
    jax.block_until_ready((f_image, f_gene))

    # Correctness check against pure-JAX reference.
    ref_image, ref_gene = _reference(data, params)
    assert f_image.shape == (B, n_out_features) and f_gene.shape == (B, n_out_features)
    assert jnp.allclose(f_image, ref_image, atol=1e-3, rtol=1e-3), \
        float(jnp.max(jnp.abs(f_image - ref_image)))
    assert jnp.allclose(f_gene, ref_gene, atol=1e-3, rtol=1e-3), \
        float(jnp.max(jnp.abs(f_gene - ref_gene)))

    print("KERNEL_OK")
</pallas_src>

<mosaic_0001>
module attributes {stable_mosaic.version = 11 : i64} {
  func.func @_igc_kernel(%arg0: i32, %arg1: memref<8x128xf32, #tpu.memory_space<vmem>>, %arg2: memref<128x128xf32, #tpu.memory_space<vmem>>, %arg3: memref<1x128xf32, #tpu.memory_space<vmem>>, %arg4: memref<128x128xf32, #tpu.memory_space<vmem>>, %arg5: memref<1x128xf32, #tpu.memory_space<vmem>>, %arg6: memref<128x128xf32, #tpu.memory_space<vmem>>, %arg7: memref<1x128xf32, #tpu.memory_space<vmem>>, %arg8: memref<8x64x64xbf16, #tpu.memory_space<vmem>>, %arg9: memref<64x128xf32, #tpu.memory_space<vmem>>, %arg10: memref<1x128xf32, #tpu.memory_space<vmem>>, %arg11: memref<8x128xf32, #tpu.memory_space<vmem>>, %arg12: memref<8x128xf32, #tpu.memory_space<vmem>>) attributes {dimension_semantics = [#tpu.dimension_semantics<parallel>], iteration_bounds = array<i64: 1>, scalar_prefetch = 0 : i64, scratch_operands = 0 : i64, tpu.core_type = #tpu.core_type<tc>, window_params = [{transform_indices = @transform_0, window_bounds = array<i64: 8, 128>}, {pipeline_mode = #tpu.pipeline_mode<synchronous>, transform_indices = @transform_1, window_bounds = array<i64: 128, 128>}, {pipeline_mode = #tpu.pipeline_mode<synchronous>, transform_indices = @transform_2, window_bounds = array<i64: 1, 128>}, {pipeline_mode = #tpu.pipeline_mode<synchronous>, transform_indices = @transform_3, window_bounds = array<i64: 128, 128>}, {pipeline_mode = #tpu.pipeline_mode<synchronous>, transform_indices = @transform_4, window_bounds = array<i64: 1, 128>}, {pipeline_mode = #tpu.pipeline_mode<synchronous>, transform_indices = @transform_5, window_bounds = array<i64: 128, 128>}, {pipeline_mode = #tpu.pipeline_mode<synchronous>, transform_indices = @transform_6, window_bounds = array<i64: 1, 128>}, {transform_indices = @transform_7, window_bounds = array<i64: 8, 64, 64>}, {pipeline_mode = #tpu.pipeline_mode<synchronous>, transform_indices = @transform_8, window_bounds = array<i64: 64, 128>}, {pipeline_mode = #tpu.pipeline_mode<synchronous>, transform_indices = @transform_9, window_bounds = array<i64: 1, 128>}, {transform_indices = @transform_10, window_bounds = array<i64: 8, 128>}, {transform_indices = @transform_11, window_bounds = array<i64: 8, 128>}]} {
    %c0 = arith.constant 0 : index
    %c0_0 = arith.constant 0 : index
    %0 = vector.load %arg1[%c0, %c0_0] : memref<8x128xf32, #tpu.memory_space<vmem>>, vector<8x128xf32>
    %c0_1 = arith.constant 0 : index
    %c0_2 = arith.constant 0 : index
    %1 = vector.load %arg2[%c0_1, %c0_2] : memref<128x128xf32, #tpu.memory_space<vmem>>, vector<128x128xf32>
    %cst = arith.constant dense<0.000000e+00> : vector<8x128xf32>
    %2 = tpu.matmul %0, %1, %cst {dimension_numbers = #tpu.dot_dimension_numbers<[1], [0], [0], [1], [0, 0, 1, 1], [], []>} : vector<8x128xf32>, vector<128x128xf32>, vector<8x128xf32> -> vector<8x128xf32>
    %c0_3 = arith.constant 0 : index
    %c0_4 = arith.constant 0 : index
    %3 = vector.load %arg3[%c0_3, %c0_4] : memref<1x128xf32, #tpu.memory_space<vmem>>, vector<1x128xf32>
    %4 = vector.broadcast %3 : vector<1x128xf32> to vector<8x128xf32>
    %5 = arith.addf %2, %4 : vector<8x128xf32>
    %cst_5 = arith.constant 0.000000e+00 : f32
    %cst_6 = arith.constant 6.000000e+00 : f32
    %6 = vector.broadcast %cst_5 : f32 to vector<8x128xf32>
    %7 = arith.maximumf %6, %5 : vector<8x128xf32>
    %8 = vector.broadcast %cst_6 : f32 to vector<8x128xf32>
    %9 = arith.minimumf %8, %7 : vector<8x128xf32>
    %c0_7 = arith.constant 0 : index
    %c0_8 = arith.constant 0 : index
    %10 = vector.load %arg4[%c0_7, %c0_8] : memref<128x128xf32, #tpu.memory_space<vmem>>, vector<128x128xf32>
    %cst_9 = arith.constant dense<0.000000e+00> : vector<8x128xf32>
    %11 = tpu.matmul %9, %10, %cst_9 {dimension_numbers = #tpu.dot_dimension_numbers<[1], [0], [0], [1], [0, 0, 1, 1], [], []>} : vector<8x128xf32>, vector<128x128xf32>, vector<8x128xf32> -> vector<8x128xf32>
    %c0_10 = arith.constant 0 : index
    %c0_11 = arith.constant 0 : index
    %12 = vector.load %arg5[%c0_10, %c0_11] : memref<1x128xf32, #tpu.memory_space<vmem>>, vector<1x128xf32>
    %13 = vector.broadcast %12 : vector<1x128xf32> to vector<8x128xf32>
    %14 = arith.addf %11, %13 : vector<8x128xf32>
    %cst_12 = arith.constant 0.000000e+00 : f32
    %cst_13 = arith.constant 6.000000e+00 : f32
    %15 = vector.broadcast %cst_12 : f32 to vector<8x128xf32>
    %16 = arith.maximumf %15, %14 : vector<8x128xf32>
    %17 = vector.broadcast %cst_13 : f32 to vector<8x128xf32>
    %18 = arith.minimumf %17, %16 : vector<8x128xf32>
    %c0_14 = arith.constant 0 : index
    %c0_15 = arith.constant 0 : index
    %19 = vector.load %arg6[%c0_14, %c0_15] : memref<128x128xf32, #tpu.memory_space<vmem>>, vector<128x128xf32>
    %cst_16 = arith.constant dense<0.000000e+00> : vector<8x128xf32>
    %20 = tpu.matmul %18, %19, %cst_16 {dimension_numbers = #tpu.dot_dimension_numbers<[1], [0], [0], [1], [0, 0, 1, 1], [], []>} : vector<8x128xf32>, vector<128x128xf32>, vector<8x128xf32> -> vector<8x128xf32>
    %c0_17 = arith.constant 0 : index
    %c0_18 = arith.constant 0 : index
    %21 = vector.load %arg7[%c0_17, %c0_18] : memref<1x128xf32, #tpu.memory_space<vmem>>, vector<1x128xf32>
    %22 = vector.broadcast %21 : vector<1x128xf32> to vector<8x128xf32>
    %23 = arith.addf %20, %22 : vector<8x128xf32>
    %c0_19 = arith.constant 0 : index
    %c0_20 = arith.constant 0 : index
    %24 = vector.load %arg12[%c0_19, %c0_20] : memref<8x128xf32, #tpu.memory_space<vmem>>, vector<8x128xf32>
    tpu.vector_store %arg12[%c0_19, %c0_20], %23 {strides = array<i32>} : memref<8x128xf32, #tpu.memory_space<vmem>>, vector<8x128xf32>,
    %c0_21 = arith.constant 0 : index
    %c0_22 = arith.constant 0 : index
    %c0_23 = arith.constant 0 : index
    %25 = vector.load %arg8[%c0_21, %c0_22, %c0_23] : memref<8x64x64xbf16, #tpu.memory_space<vmem>>, vector<8x64x64xbf16>
    %cst_24 = arith.constant 0.000000e+00 : f32
    %cst_25 = arith.constant 6.000000e+00 : f32
    %26 = arith.truncf %cst_24 : f32 to bf16
    %27 = vector.broadcast %26 : bf16 to vector<8x64x64xbf16>
    %28 = arith.maximumf %27, %25 : vector<8x64x64xbf16>
    %29 = arith.truncf %cst_25 : f32 to bf16
    %30 = vector.broadcast %29 : bf16 to vector<8x64x64xbf16>
    %31 = arith.minimumf %30, %28 : vector<8x64x64xbf16>
    %32 = arith.extf %31 : vector<8x64x64xbf16> to vector<8x64x64xf32>
    %cst_26 = arith.constant dense<0.000000e+00> : vector<8x64xf32>
    %33 = vector.multi_reduction <add>, %32, %cst_26 [1] : vector<8x64x64xf32> to vector<8x64xf32>
    %cst_27 = arith.constant 6.400000e+01 : f32
    %34 = vector.broadcast %cst_27 : f32 to vector<8x64xf32>
    %35 = arith.divf %33, %34 : vector<8x64xf32>
    %c0_28 = arith.constant 0 : index
    %c0_29 = arith.constant 0 : index
    %36 = vector.load %arg9[%c0_28, %c0_29] : memref<64x128xf32, #tpu.memory_space<vmem>>, vector<64x128xf32>
    %cst_30 = arith.constant dense<0.000000e+00> : vector<8x128xf32>
    %37 = tpu.matmul %35, %36, %cst_30 {dimension_numbers = #tpu.dot_dimension_numbers<[1], [0], [0], [1], [0, 0, 1, 1], [], []>} : vector<8x64xf32>, vector<64x128xf32>, vector<8x128xf32> -> vector<8x128xf32>
    %c0_31 = arith.constant 0 : index
    %c0_32 = arith.constant 0 : index
    %38 = vector.load %arg10[%c0_31, %c0_32] : memref<1x128xf32, #tpu.memory_space<vmem>>, vector<1x128xf32>
    %39 = vector.broadcast %38 : vector<1x128xf32> to vector<8x128xf32>
    %40 = arith.addf %37, %39 : vector<8x128xf32>
    %c0_33 = arith.constant 0 : index
    %c0_34 = arith.constant 0 : index
    %41 = vector.load %arg11[%c0_33, %c0_34] : memref<8x128xf32, #tpu.memory_space<vmem>>, vector<8x128xf32>
    tpu.vector_store %arg11[%c0_33, %c0_34], %40 {strides = array<i32>} : memref<8x128xf32, #tpu.memory_space<vmem>>, vector<8x128xf32>,
    return
  }
  func.func @transform_0(%arg0: i32) -> (i32, i32) {
    %c0_i32 = arith.constant 0 : i32
    %c0_i32_0 = arith.constant 0 : i32
    return %arg0, %c0_i32 : i32, i32
  }
  func.func @transform_1(%arg0: i32) -> (i32, i32) {
    %c0_i32 = arith.constant 0 : i32
    %c0_i32_0 = arith.constant 0 : i32
    %c0_i32_1 = arith.constant 0 : i32
    return %c0_i32, %c0_i32_0 : i32, i32
  }
  func.func @transform_2(%arg0: i32) -> (i32, i32) {
    %c0_i32 = arith.constant 0 : i32
    %c0_i32_0 = arith.constant 0 : i32
    %c0_i32_1 = arith.constant 0 : i32
    return %c0_i32, %c0_i32_0 : i32, i32
  }
  func.func @transform_3(%arg0: i32) -> (i32, i32) {
    %c0_i32 = arith.constant 0 : i32
    %c0_i32_0 = arith.constant 0 : i32
    %c0_i32_1 = arith.constant 0 : i32
    return %c0_i32, %c0_i32_0 : i32, i32
  }
  func.func @transform_4(%arg0: i32) -> (i32, i32) {
    %c0_i32 = arith.constant 0 : i32
    %c0_i32_0 = arith.constant 0 : i32
    %c0_i32_1 = arith.constant 0 : i32
    return %c0_i32, %c0_i32_0 : i32, i32
  }
  func.func @transform_5(%arg0: i32) -> (i32, i32) {
    %c0_i32 = arith.constant 0 : i32
    %c0_i32_0 = arith.constant 0 : i32
    %c0_i32_1 = arith.constant 0 : i32
    return %c0_i32, %c0_i32_0 : i32, i32
  }
  func.func @transform_6(%arg0: i32) -> (i32, i32) {
    %c0_i32 = arith.constant 0 : i32
    %c0_i32_0 = arith.constant 0 : i32
    %c0_i32_1 = arith.constant 0 : i32
    return %c0_i32, %c0_i32_0 : i32, i32
  }
  func.func @transform_7(%arg0: i32) -> (i32, i32, i32) {
    %c0_i32 = arith.constant 0 : i32
    %c0_i32_0 = arith.constant 0 : i32
    %c0_i32_1 = arith.constant 0 : i32
    return %arg0, %c0_i32, %c0_i32_0 : i32, i32, i32
  }
  func.func @transform_8(%arg0: i32) -> (i32, i32) {
    %c0_i32 = arith.constant 0 : i32
    %c0_i32_0 = arith.constant 0 : i32
    %c0_i32_1 = arith.constant 0 : i32
    return %c0_i32, %c0_i32_0 : i32, i32
  }
  func.func @transform_9(%arg0: i32) -> (i32, i32) {
    %c0_i32 = arith.constant 0 : i32
    %c0_i32_0 = arith.constant 0 : i32
    %c0_i32_1 = arith.constant 0 : i32
    return %c0_i32, %c0_i32_0 : i32, i32
  }
  func.func @transform_10(%arg0: i32) -> (i32, i32) {
    %c0_i32 = arith.constant 0 : i32
    %c0_i32_0 = arith.constant 0 : i32
    return %arg0, %c0_i32 : i32, i32
  }
  func.func @transform_11(%arg0: i32) -> (i32, i32) {
    %c0_i32 = arith.constant 0 : i32
    %c0_i32_0 = arith.constant 0 : i32
    return %arg0, %c0_i32 : i32, i32
  }
}

</mosaic_0001>

<llo_original>
// kernel: tpu_custom_call.1
$region0: #{tpu_custom_call.1}
  #allocation0 [shape = 'u32[]', space=smem, size = 0x4, offset = 0x4, fixed_abs, tag = 'smem constant byte address 0x4 - core index']
  #allocation1 [shape = 'u32[144,128]{1,0:T(1,128)}', space=vmem, size = 0x12000, scoped, tag = 'internal scratch']
  %s0 = inlined_call_operand.hbm [shape: f32[8,128], index: 0, kind: input, shape index: {}]
  %s1 = inlined_call_operand.hbm [shape: f32[128,128], index: 1, kind: input, shape index: {}]
  %s2 = inlined_call_operand.vmem [shape: f32[1,128], index: 2, kind: input, shape index: {}]
  %s3 = inlined_call_operand.hbm [shape: f32[128,128], index: 3, kind: input, shape index: {}]
  %s4 = inlined_call_operand.vmem [shape: f32[1,128], index: 4, kind: input, shape index: {}]
  %s5 = inlined_call_operand.hbm [shape: f32[128,128], index: 5, kind: input, shape index: {}]
  %s6 = inlined_call_operand.vmem [shape: f32[1,128], index: 6, kind: input, shape index: {}]
  %s7 = inlined_call_operand.hbm [shape: bf16[8,64,64], index: 7, kind: input, shape index: {}]
  %s8 = inlined_call_operand.hbm [shape: f32[64,128], index: 8, kind: input, shape index: {}]
  %s9 = inlined_call_operand.vmem [shape: f32[1,128], index: 9, kind: input, shape index: {}]
  %s10 = inlined_call_operand.hbm [shape: f32[8,128], index: 10, kind: output, shape index: {0}]
  %s11 = inlined_call_operand.hbm [shape: f32[8,128], index: 11, kind: output, shape index: {1}]
  %12 = xla_tuple %s10, %s11
  %s13 = sld [smem:[#allocation0]]
  $region82: #{tpu_custom_call.1} parent=0
    _
  %s15 = ssub.s32 1, %s13
  %s16 = scalar_select 0, %s15, %s13
  $region1: #{tpu_custom_call.1} parent=0
    #allocation2 [shape = 'u8[4096]{0}', space=vmem, size = 0x1000, scoped, tag = 'input window, operand 0, single buffered']
    #allocation3 [shape = 's32[1]{0}', space=sflag, size = 0x4, scoped, tag = 'scoped memory for tpu_custom_call.1']
    #allocation4 [shape = 's32[1]{0}', space=sflag, size = 0x4, scoped, tag = 'scoped memory for tpu_custom_call.1']
    #allocation5 [shape = 'u8[65536]{0}', space=vmem, size = 0x10000, scoped, tag = 'input window, operand 1, single buffered']
    #allocation6 [shape = 's32[1]{0}', space=sflag, size = 0x4, scoped, tag = 'scoped memory for tpu_custom_call.1']
    #allocation7 [shape = 'u8[65536]{0}', space=vmem, size = 0x10000, scoped, tag = 'input window, operand 3, single buffered']
    #allocation8 [shape = 'u8[65536]{0}', space=vmem, size = 0x10000, scoped, tag = 'input window, operand 5, single buffered']
    #allocation9 [shape = 's32[1]{0}', space=sflag, size = 0x4, scoped, tag = 'scoped memory for tpu_custom_call.1']
    #allocation10 [shape = 'u8[131072]{0}', space=vmem, size = 0x20000, scoped, tag = 'input window, operand 7, single buffered']
    #allocation11 [shape = 'u8[32768]{0}', space=vmem, size = 0x8000, scoped, tag = 'input window, operand 8, single buffered']
    #allocation12 [shape = 's32[1]{0}', space=sflag, size = 0x4, scoped, tag = 'scoped memory for tpu_custom_call.1']
    #allocation13 [shape = 'u8[4096]{0}', space=vmem, size = 0x1000, scoped, tag = 'output window, operand 0, single buffered']
    #allocation14 [shape = 'u8[4096]{0}', space=vmem, size = 0x1000, scoped, tag = 'output window, operand 1, single buffered']
    #allocation15 [shape = 's32[1]{0}', space=sflag, size = 0x4, scoped, tag = 'scoped memory for tpu_custom_call.1']
    %17 = vsyncpa [#allocation3], 0
    %18 = vsyncpa [#allocation6], 0
    %19 = vsyncpa [#allocation9], 0
    %20 = vsyncpa [#allocation12], 0
    %21 = vsyncpa [#allocation4], 0
    %22 = vsyncpa [#allocation15], 0
    // Predicated region
    $region2: #{tpu_custom_call.1} parent=1 // pred_check
      _
    $region3: #{tpu_custom_call.1} parent=1 // pred_check_branch
      %24 = sbr.rel (0) target = $region5
    $region4: #{tpu_custom_call.1} parent=1 // pred_region
      %s26 = ssub.s32 128, 128
      %27 = vsyncadd [#allocation3], %s26
      %s29 = sshll.u32 [#allocation2], 4
      %s30 = int_to_ptr.vmem [resolvable:$true] %s29
      %32 = dma.hbm_to_vmem [thread:$0]  %s0, 128, %s30, [#allocation3]
    $region5: #{tpu_custom_call.1} parent=1 // pred_fallthru
      _
    // Predicated region
    $region6: #{tpu_custom_call.1} parent=1 // pred_check
      _
    $region7: #{tpu_custom_call.1} parent=1 // pred_check_branch
      %34 = sbr.rel (0) target = $region9
    $region8: #{tpu_custom_call.1} parent=1 // pred_region
      %s36 = ssub.s32 2048, 2048
      %37 = vsyncadd [#allocation6], %s36
      %s38 = sshll.u32 [#allocation5], 4
      %s39 = int_to_ptr.vmem [resolvable:$true] %s38
      %44 = dma.hbm_to_vmem [thread:$0]  %s1, 2048, %s39, [#allocation6], 128, 128, 8
    $region9: #{tpu_custom_call.1} parent=1 // pred_fallthru
      _
    // Predicated region
    $region10: #{tpu_custom_call.1} parent=1 // pred_check
      _
    $region11: #{tpu_custom_call.1} parent=1 // pred_check_branch
      %46 = sbr.rel (0) target = $region13
    $region12: #{tpu_custom_call.1} parent=1 // pred_region
      _
    $region13: #{tpu_custom_call.1} parent=1 // pred_fallthru
      _
    // Predicated region
    $region14: #{tpu_custom_call.1} parent=1 // pred_check
      _
    $region15: #{tpu_custom_call.1} parent=1 // pred_check_branch
      %48 = sbr.rel (0) target = $region17
    $region16: #{tpu_custom_call.1} parent=1 // pred_region
      %s50 = ssub.s32 2048, 2048
      %51 = vsyncadd [#allocation6], %s50
      %s52 = sshll.u32 [#allocation7], 4
      %s53 = int_to_ptr.vmem [resolvable:$true] %s52
      %58 = dma.hbm_to_vmem [thread:$0]  %s3, 2048, %s53, [#allocation6], 128, 128, 8
    $region17: #{tpu_custom_call.1} parent=1 // pred_fallthru
      _
    // Predicated region
    $region18: #{tpu_custom_call.1} parent=1 // pred_check
      _
    $region19: #{tpu_custom_call.1} parent=1 // pred_check_branch
      %60 = sbr.rel (0) target = $region21
    $region20: #{tpu_custom_call.1} parent=1 // pred_region
      _
    $region21: #{tpu_custom_call.1} parent=1 // pred_fallthru
      _
    // Predicated region
    $region22: #{tpu_custom_call.1} parent=1 // pred_check
      _
    $region23: #{tpu_custom_call.1} parent=1 // pred_check_branch
      %62 = sbr.rel (0) target = $region25
    $region24: #{tpu_custom_call.1} parent=1 // pred_region
      %s64 = ssub.s32 2048, 2048
      %65 = vsyncadd [#allocation9], %s64
      %s66 = sshll.u32 [#allocation8], 4
      %s67 = int_to_ptr.vmem [resolvable:$true] %s66
      %72 = dma.hbm_to_vmem [thread:$0]  %s5, 2048, %s67, [#allocation9], 128, 128, 8
    $region25: #{tpu_custom_call.1} parent=1 // pred_fallthru
      _
    // Predicated region
    $region26: #{tpu_custom_call.1} parent=1 // pred_check
      _
    $region27: #{tpu_custom_call.1} parent=1 // pred_check_branch
      %74 = sbr.rel (0) target = $region29
    $region28: #{tpu_custom_call.1} parent=1 // pred_region
      _
    $region29: #{tpu_custom_call.1} parent=1 // pred_fallthru
      _
    // Predicated region
    $region30: #{tpu_custom_call.1} parent=1 // pred_check
      _
    $region31: #{tpu_custom_call.1} parent=1 // pred_check_branch
      %76 = sbr.rel (0) target = $region33
    $region32: #{tpu_custom_call.1} parent=1 // pred_region
      %s78 = ssub.s32 4096, 4096
      %79 = vsyncadd [#allocation9], %s78
      %s80 = sshll.u32 [#allocation10], 4
      %s81 = int_to_ptr.vmem [resolvable:$true] %s80
      %86 = dma.hbm_to_vmem [thread:$0]  %s7, 4096, %s81, [#allocation9], 64, 64, 4
    $region33: #{tpu_custom_call.1} parent=1 // pred_fallthru
      _
    // Predicated region
    $region34: #{tpu_custom_call.1} parent=1 // pred_check
      _
    $region35: #{tpu_custom_call.1} parent=1 // pred_check_branch
      %88 = sbr.rel (0) target = $region37
    $region36: #{tpu_custom_call.1} parent=1 // pred_region
      %s90 = ssub.s32 1024, 1024
      %91 = vsyncadd [#allocation12], %s90
      %s92 = sshll.u32 [#allocation11], 4
      %s93 = int_to_ptr.vmem [resolvable:$true] %s92
      %98 = dma.hbm_to_vmem [thread:$0]  %s8, 1024, %s93, [#allocation12], 128, 128, 8
    $region37: #{tpu_custom_call.1} parent=1 // pred_fallthru
      _
    // Predicated region
    $region38: #{tpu_custom_call.1} parent=1 // pred_check
      _
    $region39: #{tpu_custom_call.1} parent=1 // pred_check_branch
      %100 = sbr.rel (0) target = $region41
    $region40: #{tpu_custom_call.1} parent=1 // pred_region
      _
    $region41: #{tpu_custom_call.1} parent=1 // pred_fallthru
      _
    // Predicated region
    $region42: #{tpu_custom_call.1} parent=1 // pred_check
      _
    $region43: #{tpu_custom_call.1} parent=1 // pred_check_branch
      %102 = sbr.rel (0) target = $region45
    $region44: #{tpu_custom_call.1} parent=1 // pred_region
      %103 = dma.done [#allocation3], 128
    $region45: #{tpu_custom_call.1} parent=1 // pred_fallthru
      _
    // Predicated region
    $region46: #{tpu_custom_call.1} parent=1 // pred_check
      _
    $region47: #{tpu_custom_call.1} parent=1 // pred_check_branch
      %105 = sbr.rel (0) target = $region49
    $region48: #{tpu_custom_call.1} parent=1 // pred_region
      %106 = dma.done [#allocation6], 2048
    $region49: #{tpu_custom_call.1} parent=1 // pred_fallthru
      _
    // Predicated region
    $region50: #{tpu_custom_call.1} parent=1 // pred_check
      _
    $region51: #{tpu_custom_call.1} parent=1 // pred_check_branch
      %108 = sbr.rel (0) target = $region53
    $region52: #{tpu_custom_call.1} parent=1 // pred_region
      %109 = dma.done [#allocation6], 2048
    $region53: #{tpu_custom_call.1} parent=1 // pred_fallthru
      _
    // Predicated region
    $region54: #{tpu_custom_call.1} parent=1 // pred_check
      _
    $region55: #{tpu_custom_call.1} parent=1 // pred_check_branch
      %111 = sbr.rel (0) target = $region57
    $region56: #{tpu_custom_call.1} parent=1 // pred_region
      %112 = dma.done [#allocation9], 2048
    $region57: #{tpu_custom_call.1} parent=1 // pred_fallthru
      _
    // Predicated region
    $region58: #{tpu_custom_call.1} parent=1 // pred_check
      _
    $region59: #{tpu_custom_call.1} parent=1 // pred_check_branch
      %114 = sbr.rel (0) target = $region61
    $region60: #{tpu_custom_call.1} parent=1 // pred_region
      %115 = dma.done [#allocation9], 4096
    $region61: #{tpu_custom_call.1} parent=1 // pred_fallthru
      _
    // Predicated region
    $region62: #{tpu_custom_call.1} parent=1 // pred_check
      _
    $region63: #{tpu_custom_call.1} parent=1 // pred_check_branch
      %117 = sbr.rel (0) target = $region65
    $region64: #{tpu_custom_call.1} parent=1 // pred_region
      %118 = dma.done [#allocation12], 1024
    $region65: #{tpu_custom_call.1} parent=1 // pred_fallthru
      _
    %v121 = vld [vmem:[#allocation2] sm:$0xff]
    %v122 = vld [vmem:[#allocation5] sm:$0xff]
    %v123 = vld [vmem:[#allocation5 + $0x8] sm:$0xff]
    %v124 = vld [vmem:[#allocation5 + $0x10] sm:$0xff]
    %v125 = vld [vmem:[#allocation5 + $0x18] sm:$0xff]
    %v126 = vld [vmem:[#allocation5 + $0x20] sm:$0xff]
    %v127 = vld [vmem:[#allocation5 + $0x28] sm:$0xff]
    %v128 = vld [vmem:[#allocation5 + $0x30] sm:$0xff]
    %v129 = vld [vmem:[#allocation5 + $0x38] sm:$0xff]
    %v130 = vld [vmem:[#allocation5 + $0x40] sm:$0xff]
    %v131 = vld [vmem:[#allocation5 + $0x48] sm:$0xff]
    %v132 = vld [vmem:[#allocation5 + $0x50] sm:$0xff]
    %v133 = vld [vmem:[#allocation5 + $0x58] sm:$0xff]
    %v134 = vld [vmem:[#allocation5 + $0x60] sm:$0xff]
    %v135 = vld [vmem:[#allocation5 + $0x68] sm:$0xff]
    %v136 = vld [vmem:[#allocation5 + $0x70] sm:$0xff]
    %v137 = vld [vmem:[#allocation5 + $0x78] sm:$0xff]
    %v138 = vld [vmem:[%s2] sm:$0x1]
    %v140 = vlaneseq
    %v141 = vshrl.u32 %v140, 7
    %v142 = vsub.s32 0, %v141
    %v143 = vrot.slane %v138, %v142
    %145 = vmatprep.subr.mxu0 0.0
    %146 = vmatpush1.msra.mxu0 %v122
    %147 = vmatprep.subr.mxu0 0.0
    %148 = vmatpush1.msra.mxu0 %v123
    %149 = vmatprep.subr.mxu0 0.0
    %150 = vmatpush1.msra.mxu0 %v124
    %151 = vmatprep.subr.mxu0 0.0
    %152 = vmatpush1.msra.mxu0 %v125
    %153 = vmatprep.subr.mxu0 0.0
    %154 = vmatpush1.msra.mxu0 %v126
    %155 = vmatprep.subr.mxu0 0.0
    %156 = vmatpush1.msra.mxu0 %v127
    %157 = vmatprep.subr.mxu0 0.0
    %158 = vmatpush1.msra.mxu0 %v128
    %159 = vmatprep.subr.mxu0 0.0
    %160 = vmatpush1.msra.mxu0 %v129
    %161 = vmatprep.subr.mxu0 0.0
    %162 = vmatpush1.msra.mxu0 %v130
    %163 = vmatprep.subr.mxu0 0.0
    %164 = vmatpush1.msra.mxu0 %v131
    %165 = vmatprep.subr.mxu0 0.0
    %166 = vmatpush1.msra.mxu0 %v132
    %167 = vmatprep.subr.mxu0 0.0
    %168 = vmatpush1.msra.mxu0 %v133
    %169 = vmatprep.subr.mxu0 0.0
    %170 = vmatpush1.msra.mxu0 %v134
    %171 = vmatprep.subr.mxu0 0.0
    %172 = vmatpush1.msra.mxu0 %v135
    %173 = vmatprep.subr.mxu0 0.0
    %174 = vmatpush1.msra.mxu0 %v136
    %175 = vmatprep.subr.mxu0 0.0
    %176 = vmatpush1.msra.mxu0 %v137
    %177 = vmatprep.subr.mxu0 0.0
    %178 = vmatpush1.msra.mxu0 0.0
    %179 = vmatprep.subr.mxu0 0.0
    %180 = vmatpush1.msra.mxu0 0.0
    %181 = vmatprep.subr.mxu0 0.0
    %182 = vmatpush1.msra.mxu0 0.0
    %183 = vmatprep.subr.mxu0 0.0
    %184 = vmatpush1.msra.mxu0 0.0
    %185 = vmatprep.subr.mxu0 0.0
    %186 = vmatpush1.msra.mxu0 0.0
    %187 = vmatprep.subr.mxu0 0.0
    %188 = vmatpush1.msra.mxu0 0.0
    %189 = vmatprep.subr.mxu0 0.0
    %190 = vmatpush1.msra.mxu0 0.0
    %191 = vmatprep.subr.mxu0 0.0
    %192 = vmatpush1.msra.mxu0 0.0
    %193 = vmatprep.subr.mxu0 0.0
    %194 = vmatpush1.msra.mxu0 0.0
    %195 = vmatprep.subr.mxu0 0.0
    %196 = vmatpush1.msra.mxu0 0.0
    %197 = vmatprep.subr.mxu0 0.0
    %198 = vmatpush1.msra.mxu0 0.0
    %199 = vmatprep.subr.mxu0 0.0
    %200 = vmatpush1.msra.mxu0 0.0
    %201 = vmatprep.subr.mxu0 0.0
    %202 = vmatpush1.msra.mxu0 0.0
    %203 = vmatprep.subr.mxu0 0.0
    %204 = vmatpush1.msra.mxu0 0.0
    %205 = vmatprep.subr.mxu0 0.0
    %206 = vmatpush1.msra.mxu0 0.0
    %207 = vmatprep.subr.mxu0 0.0
    %208 = vmatpush1.msra.mxu0 0.0
    %209 = vmatprep.mubr.f32.mxu0 0.0
    %210 = vmatmul.mubr.f32.gmra.mrb[0].mxu0 %v121
    %v211 = vpop.f32.mrb[0].mxu0
    %v212 = vadd.f32 %v143, %v211
    %v213 = vpop.f32.mrb[0].mxu0
    %214 = vdwg.mxu0
    %v215 = vmax.f32 %v212, 0.0
    %v216 = vmin.f32 %v215, 6.0
    %v217 = vld [vmem:[#allocation7] sm:$0xff]
    %v218 = vld [vmem:[#allocation7 + $0x8] sm:$0xff]
    %v219 = vld [vmem:[#allocation7 + $0x10] sm:$0xff]
    %v220 = vld [vmem:[#allocation7 + $0x18] sm:$0xff]
    %v221 = vld [vmem:[#allocation7 + $0x20] sm:$0xff]
    %v222 = vld [vmem:[#allocation7 + $0x28] sm:$0xff]
    %v223 = vld [vmem:[#allocation7 + $0x30] sm:$0xff]
    %v224 = vld [vmem:[#allocation7 + $0x38] sm:$0xff]
    %v225 = vld [vmem:[#allocation7 + $0x40] sm:$0xff]
    %v226 = vld [vmem:[#allocation7 + $0x48] sm:$0xff]
    %v227 = vld [vmem:[#allocation7 + $0x50] sm:$0xff]
    %v228 = vld [vmem:[#allocation7 + $0x58] sm:$0xff]
    %v229 = vld [vmem:[#allocation7 + $0x60] sm:$0xff]
    %v230 = vld [vmem:[#allocation7 + $0x68] sm:$0xff]
    %v231 = vld [vmem:[#allocation7 + $0x70] sm:$0xff]
    %v232 = vld [vmem:[#allocation7 + $0x78] sm:$0xff]
    %v233 = vld [vmem:[%s4] sm:$0x1]
    %v235 = vlaneseq
    %v236 = vshrl.u32 %v235, 7
    %v237 = vsub.s32 0, %v236
    %v238 = vrot.slane %v233, %v237
    %240 = vmatprep.subr.mxu0 0.0
    %241 = vmatpush1.msra.mxu0 %v217
    %242 = vmatprep.subr.mxu0 0.0
    %243 = vmatpush1.msra.mxu0 %v218
    %244 = vmatprep.subr.mxu0 0.0
    %245 = vmatpush1.msra.mxu0 %v219
    %246 = vmatprep.subr.mxu0 0.0
    %247 = vmatpush1.msra.mxu0 %v220
    %248 = vmatprep.subr.mxu0 0.0
    %249 = vmatpush1.msra.mxu0 %v221
    %250 = vmatprep.subr.mxu0 0.0
    %251 = vmatpush1.msra.mxu0 %v222
    %252 = vmatprep.subr.mxu0 0.0
    %253 = vmatpush1.msra.mxu0 %v223
    %254 = vmatprep.subr.mxu0 0.0
    %255 = vmatpush1.msra.mxu0 %v224
    %256 = vmatprep.subr.mxu0 0.0
    %257 = vmatpush1.msra.mxu0 %v225
    %258 = vmatprep.subr.mxu0 0.0
    %259 = vmatpush1.msra.mxu0 %v226
    %260 = vmatprep.subr.mxu0 0.0
    %261 = vmatpush1.msra.mxu0 %v227
    %262 = vmatprep.subr.mxu0 0.0
    %263 = vmatpush1.msra.mxu0 %v228
    %264 = vmatprep.subr.mxu0 0.0
    %265 = vmatpush1.msra.mxu0 %v229
    %266 = vmatprep.subr.mxu0 0.0
    %267 = vmatpush1.msra.mxu0 %v230
    %268 = vmatprep.subr.mxu0 0.0
    %269 = vmatpush1.msra.mxu0 %v231
    %270 = vmatprep.subr.mxu0 0.0
    %271 = vmatpush1.msra.mxu0 %v232
    %272 = vmatprep.subr.mxu0 0.0
    %273 = vmatpush1.msra.mxu0 0.0
    %274 = vmatprep.subr.mxu0 0.0
    %275 = vmatpush1.msra.mxu0 0.0
    %276 = vmatprep.subr.mxu0 0.0
    %277 = vmatpush1.msra.mxu0 0.0
    %278 = vmatprep.subr.mxu0 0.0
    %279 = vmatpush1.msra.mxu0 0.0
    %280 = vmatprep.subr.mxu0 0.0
    %281 = vmatpush1.msra.mxu0 0.0
    %282 = vmatprep.subr.mxu0 0.0
    %283 = vmatpush1.msra.mxu0 0.0
    %284 = vmatprep.subr.mxu0 0.0
    %285 = vmatpush1.msra.mxu0 0.0
    %286 = vmatprep.subr.mxu0 0.0
    %287 = vmatpush1.msra.mxu0 0.0
    %288 = vmatprep.subr.mxu0 0.0
    %289 = vmatpush1.msra.mxu0 0.0
    %290 = vmatprep.subr.mxu0 0.0
    %291 = vmatpush1.msra.mxu0 0.0
    %292 = vmatprep.subr.mxu0 0.0
    %293 = vmatpush1.msra.mxu0 0.0
    %294 = vmatprep.subr.mxu0 0.0
    %295 = vmatpush1.msra.mxu0 0.0
    %296 = vmatprep.subr.mxu0 0.0
    %297 = vmatpush1.msra.mxu0 0.0
    %298 = vmatprep.subr.mxu0 0.0
    %299 = vmatpush1.msra.mxu0 0.0
    %300 = vmatprep.subr.mxu0 0.0
    %301 = vmatpush1.msra.mxu0 0.0
    %302 = vmatprep.subr.mxu0 0.0
    %303 = vmatpush1.msra.mxu0 0.0
    %304 = vmatprep.mubr.f32.mxu0 0.0
    %305 = vmatmul.mubr.f32.gmra.mrb[0].mxu0 %v216
    %v306 = vpop.f32.mrb[0].mxu0
    %v307 = vadd.f32 %v238, %v306
    %v308 = vpop.f32.mrb[0].mxu0
    %309 = vdwg.mxu0
    %v310 = vmax.f32 %v307, 0.0
    %v311 = vmin.f32 %v310, 6.0
    %v312 = vld [vmem:[#allocation8] sm:$0xff]
    %v313 = vld [vmem:[#allocation8 + $0x8] sm:$0xff]
    %v314 = vld [vmem:[#allocation8 + $0x10] sm:$0xff]
    %v315 = vld [vmem:[#allocation8 + $0x18] sm:$0xff]
    %v316 = vld [vmem:[#allocation8 + $0x20] sm:$0xff]
    %v317 = vld [vmem:[#allocation8 + $0x28] sm:$0xff]
    %v318 = vld [vmem:[#allocation8 + $0x30] sm:$0xff]
    %v319 = vld [vmem:[#allocation8 + $0x38] sm:$0xff]
    %v320 = vld [vmem:[#allocation8 + $0x40] sm:$0xff]
    %v321 = vld [vmem:[#allocation8 + $0x48] sm:$0xff]
    %v322 = vld [vmem:[#allocation8 + $0x50] sm:$0xff]
    %v323 = vld [vmem:[#allocation8 + $0x58] sm:$0xff]
    %v324 = vld [vmem:[#allocation8 + $0x60] sm:$0xff]
    %v325 = vld [vmem:[#allocation8 + $0x68] sm:$0xff]
    %v326 = vld [vmem:[#allocation8 + $0x70] sm:$0xff]
    %v327 = vld [vmem:[#allocation8 + $0x78] sm:$0xff]
    %v328 = vld [vmem:[%s6] sm:$0x1]
    %v330 = vlaneseq
    %v331 = vshrl.u32 %v330, 7
    %v332 = vsub.s32 0, %v331
    %v333 = vrot.slane %v328, %v332
    %335 = vmatprep.subr.mxu0 0.0
    %336 = vmatpush1.msra.mxu0 %v312
    %337 = vmatprep.subr.mxu0 0.0
    %338 = vmatpush1.msra.mxu0 %v313
    %339 = vmatprep.subr.mxu0 0.0
    %340 = vmatpush1.msra.mxu0 %v314
    %341 = vmatprep.subr.mxu0 0.0
    %342 = vmatpush1.msra.mxu0 %v315
    %343 = vmatprep.subr.mxu0 0.0
    %344 = vmatpush1.msra.mxu0 %v316
    %345 = vmatprep.subr.mxu0 0.0
    %346 = vmatpush1.msra.mxu0 %v317
    %347 = vmatprep.subr.mxu0 0.0
    %348 = vmatpush1.msra.mxu0 %v318
    %349 = vmatprep.subr.mxu0 0.0
    %350 = vmatpush1.msra.mxu0 %v319
    %351 = vmatprep.subr.mxu0 0.0
    %352 = vmatpush1.msra.mxu0 %v320
    %353 = vmatprep.subr.mxu0 0.0
    %354 = vmatpush1.msra.mxu0 %v321
    %355 = vmatprep.subr.mxu0 0.0
    %356 = vmatpush1.msra.mxu0 %v322
    %357 = vmatprep.subr.mxu0 0.0
    %358 = vmatpush1.msra.mxu0 %v323
    %359 = vmatprep.subr.mxu0 0.0
    %360 = vmatpush1.msra.mxu0 %v324
    %361 = vmatprep.subr.mxu0 0.0
    %362 = vmatpush1.msra.mxu0 %v325
    %363 = vmatprep.subr.mxu0 0.0
    %364 = vmatpush1.msra.mxu0 %v326
    %365 = vmatprep.subr.mxu0 0.0
    %366 = vmatpush1.msra.mxu0 %v327
    %367 = vmatprep.subr.mxu0 0.0
    %368 = vmatpush1.msra.mxu0 0.0
    %369 = vmatprep.subr.mxu0 0.0
    %370 = vmatpush1.msra.mxu0 0.0
    %371 = vmatprep.subr.mxu0 0.0
    %372 = vmatpush1.msra.mxu0 0.0
    %373 = vmatprep.subr.mxu0 0.0
    %374 = vmatpush1.msra.mxu0 0.0
    %375 = vmatprep.subr.mxu0 0.0
    %376 = vmatpush1.msra.mxu0 0.0
    %377 = vmatprep.subr.mxu0 0.0
    %378 = vmatpush1.msra.mxu0 0.0
    %379 = vmatprep.subr.mxu0 0.0
    %380 = vmatpush1.msra.mxu0 0.0
    %381 = vmatprep.subr.mxu0 0.0
    %382 = vmatpush1.msra.mxu0 0.0
    %383 = vmatprep.subr.mxu0 0.0
    %384 = vmatpush1.msra.mxu0 0.0
    %385 = vmatprep.subr.mxu0 0.0
    %386 = vmatpush1.msra.mxu0 0.0
    %387 = vmatprep.subr.mxu0 0.0
    %388 = vmatpush1.msra.mxu0 0.0
    %389 = vmatprep.subr.mxu0 0.0
    %390 = vmatpush1.msra.mxu0 0.0
    %391 = vmatprep.subr.mxu0 0.0
    %392 = vmatpush1.msra.mxu0 0.0
    %393 = vmatprep.subr.mxu0 0.0
    %394 = vmatpush1.msra.mxu0 0.0
    %395 = vmatprep.subr.mxu0 0.0
    %396 = vmatpush1.msra.mxu0 0.0
    %397 = vmatprep.subr.mxu0 0.0
    %398 = vmatpush1.msra.mxu0 0.0
    %399 = vmatprep.mubr.f32.mxu0 0.0
    %400 = vmatmul.mubr.f32.gmra.mrb[0].mxu0 %v311
    %v401 = vpop.f32.mrb[0].mxu0
    %v402 = vadd.f32 %v333, %v401
    %v403 = vpop.f32.mrb[0].mxu0
    %404 = vdwg.mxu0
    %405 = vst [vmem:[#allocation14] sm:$0xff] %v402
    %v406 = vld [vmem:[#allocation10] sm:$0xf]
    %v407 = vld [vmem:[#allocation10 + $0x4] sm:$0xf]
    %v408 = vld [vmem:[#allocation10 + $0x8] sm:$0xf]
    %v409 = vld [vmem:[#allocation10 + $0xc] sm:$0xf]
    %v410 = vld [vmem:[#allocation10 + $0x10] sm:$0xf]
    %v411 = vld [vmem:[#allocation10 + $0x14] sm:$0xf]
    %v412 = vld [vmem:[#allocation10 + $0x18] sm:$0xf]
    %v413 = vld [vmem:[#allocation10 + $0x1c] sm:$0xf]
    %v414 = vld [vmem:[#allocation10 + $0x20] sm:$0xf]
    %v415 = vld [vmem:[#allocation10 + $0x24] sm:$0xf]
    %v416 = vld [vmem:[#allocation10 + $0x28] sm:$0xf]
    %v417 = vld [vmem:[#allocation10 + $0x2c] sm:$0xf]
    %v418 = vld [vmem:[#allocation10 + $0x30] sm:$0xf]
    %v419 = vld [vmem:[#allocation10 + $0x34] sm:$0xf]
    %v420 = vld [vmem:[#allocation10 + $0x38] sm:$0xf]
    %v421 = vld [vmem:[#allocation10 + $0x3c] sm:$0xf]
    %v422 = vld [vmem:[#allocation10 + $0x40] sm:$0xf]
    %v423 = vld [vmem:[#allocation10 + $0x44] sm:$0xf]
    %v424 = vld [vmem:[#allocation10 + $0x48] sm:$0xf]
    %v425 = vld [vmem:[#allocation10 + $0x4c] sm:$0xf]
    %v426 = vld [vmem:[#allocation10 + $0x50] sm:$0xf]
    %v427 = vld [vmem:[#allocation10 + $0x54] sm:$0xf]
    %v428 = vld [vmem:[#allocation10 + $0x58] sm:$0xf]
    %v429 = vld [vmem:[#allocation10 + $0x5c] sm:$0xf]
    %v430 = vld [vmem:[#allocation10 + $0x60] sm:$0xf]
    %v431 = vld [vmem:[#allocation10 + $0x64] sm:$0xf]
    %v432 = vld [vmem:[#allocation10 + $0x68] sm:$0xf]
    %v433 = vld [vmem:[#allocation10 + $0x6c] sm:$0xf]
    %v434 = vld [vmem:[#allocation10 + $0x70] sm:$0xf]
    %v435 = vld [vmem:[#allocation10 + $0x74] sm:$0xf]
    %v436 = vld [vmem:[#allocation10 + $0x78] sm:$0xf]
    %v437 = vld [vmem:[#allocation10 + $0x7c] sm:$0xf]
    %v438 = vld [vmem:[#allocation10 + $0x80] sm:$0xf]
    %v439 = vld [vmem:[#allocation10 + $0x84] sm:$0xf]
    %v440 = vld [vmem:[#allocation10 + $0x88] sm:$0xf]
    %v441 = vld [vmem:[#allocation10 + $0x8c] sm:$0xf]
    %v442 = vld [vmem:[#allocation10 + $0x90] sm:$0xf]
    %v443 = vld [vmem:[#allocation10 + $0x94] sm:$0xf]
    %v444 = vld [vmem:[#allocation10 + $0x98] sm:$0xf]
    %v445 = vld [vmem:[#allocation10 + $0x9c] sm:$0xf]
    %v446 = vld [vmem:[#allocation10 + $0xa0] sm:$0xf]
    %v447 = vld [vmem:[#allocation10 + $0xa4] sm:$0xf]
    %v448 = vld [vmem:[#allocation10 + $0xa8] sm:$0xf]
    %v449 = vld [vmem:[#allocation10 + $0xac] sm:$0xf]
    %v450 = vld [vmem:[#allocation10 + $0xb0] sm:$0xf]
    %v451 = vld [vmem:[#allocation10 + $0xb4] sm:$0xf]
    %v452 = vld [vmem:[#allocation10 + $0xb8] sm:$0xf]
    %v453 = vld [vmem:[#allocation10 + $0xbc] sm:$0xf]
    %v454 = vld [vmem:[#allocation10 + $0xc0] sm:$0xf]
    %v455 = vld [vmem:[#allocation10 + $0xc4] sm:$0xf]
    %v456 = vld [vmem:[#allocation10 + $0xc8] sm:$0xf]
    %v457 = vld [vmem:[#allocation10 + $0xcc] sm:$0xf]
    %v458 = vld [vmem:[#allocation10 + $0xd0] sm:$0xf]
    %v459 = vld [vmem:[#allocation10 + $0xd4] sm:$0xf]
    %v460 = vld [vmem:[#allocation10 + $0xd8] sm:$0xf]
    %v461 = vld [vmem:[#allocation10 + $0xdc] sm:$0xf]
    %v462 = vld [vmem:[#allocation10 + $0xe0] sm:$0xf]
    %v463 = vld [vmem:[#allocation10 + $0xe4] sm:$0xf]
    %v464 = vld [vmem:[#allocation10 + $0xe8] sm:$0xf]
    %v465 = vld [vmem:[#allocation10 + $0xec] sm:$0xf]
    %v466 = vld [vmem:[#allocation10 + $0xf0] sm:$0xf]
    %v467 = vld [vmem:[#allocation10 + $0xf4] sm:$0xf]
    %v468 = vld [vmem:[#allocation10 + $0xf8] sm:$0xf]
    %v469 = vld [vmem:[#allocation10 + $0xfc] sm:$0xf]
    %v470 = vmax.bf16 %v406, 0
    %v471 = vmax.bf16 %v407, 0
    %v472 = vmax.bf16 %v408, 0
    %v473 = vmax.bf16 %v409, 0
    %v474 = vmax.bf16 %v410, 0
    %v475 = vmax.bf16 %v411, 0
    %v476 = vmax.bf16 %v412, 0
    %v477 = vmax.bf16 %v413, 0
    %v478 = vmax.bf16 %v414, 0
    %v479 = vmax.bf16 %v415, 0
    %v480 = vmax.bf16 %v416, 0
    %v481 = vmax.bf16 %v417, 0
    %v482 = vmax.bf16 %v418, 0
    %v483 = vmax.bf16 %v419, 0
    %v484 = vmax.bf16 %v420, 0
    %v485 = vmax.bf16 %v421, 0
    %v486 = vmax.bf16 %v422, 0
    %v487 = vmax.bf16 %v423, 0
    %v488 = vmax.bf16 %v424, 0
    %v489 = vmax.bf16 %v425, 0
    %v490 = vmax.bf16 %v426, 0
    %v491 = vmax.bf16 %v427, 0
    %v492 = vmax.bf16 %v428, 0
    %v493 = vmax.bf16 %v429, 0
    %v494 = vmax.bf16 %v430, 0
    %v495 = vmax.bf16 %v431, 0
    %v496 = vmax.bf16 %v432, 0
    %v497 = vmax.bf16 %v433, 0
    %v498 = vmax.bf16 %v434, 0
    %v499 = vmax.bf16 %v435, 0
    %v500 = vmax.bf16 %v436, 0
    %v501 = vmax.bf16 %v437, 0
    %v502 = vmax.bf16 %v438, 0
    %v503 = vmax.bf16 %v439, 0
    %v504 = vmax.bf16 %v440, 0
    %v505 = vmax.bf16 %v441, 0
    %v506 = vmax.bf16 %v442, 0
    %v507 = vmax.bf16 %v443, 0
    %v508 = vmax.bf16 %v444, 0
    %v509 = vmax.bf16 %v445, 0
    %v510 = vmax.bf16 %v446, 0
    %v511 = vmax.bf16 %v447, 0
    %v512 = vmax.bf16 %v448, 0
    %v513 = vmax.bf16 %v449, 0
    %v514 = vmax.bf16 %v450, 0
    %v515 = vmax.bf16 %v451, 0
    %v516 = vmax.bf16 %v452, 0
    %v517 = vmax.bf16 %v453, 0
    %v518 = vmax.bf16 %v454, 0
    %v519 = vmax.bf16 %v455, 0
    %v520 = vmax.bf16 %v456, 0
    %v521 = vmax.bf16 %v457, 0
    %v522 = vmax.bf16 %v458, 0
    %v523 = vmax.bf16 %v459, 0
    %v524 = vmax.bf16 %v460, 0
    %v525 = vmax.bf16 %v461, 0
    %v526 = vmax.bf16 %v462, 0
    %v527 = vmax.bf16 %v463, 0
    %v528 = vmax.bf16 %v464, 0
    %v529 = vmax.bf16 %v465, 0
    %v530 = vmax.bf16 %v466, 0
    %v531 = vmax.bf16 %v467, 0
    %v532 = vmax.bf16 %v468, 0
    %v533 = vmax.bf16 %v469, 0
    %v534 = vmin.bf16 %v470, 1086341312
    %v535 = vmin.bf16 %v471, 1086341312
    %v536 = vmin.bf16 %v472, 1086341312
    %v537 = vmin.bf16 %v473, 1086341312
    %v538 = vmin.bf16 %v474, 1086341312
    %v539 = vmin.bf16 %v475, 1086341312
    %v540 = vmin.bf16 %v476, 1086341312
    %v541 = vmin.bf16 %v477, 1086341312
    %v542 = vmin.bf16 %v478, 1086341312
    %v543 = vmin.bf16 %v479, 1086341312
    %v544 = vmin.bf16 %v480, 1086341312
    %v545 = vmin.bf16 %v481, 1086341312
    %v546 = vmin.bf16 %v482, 1086341312
    %v547 = vmin.bf16 %v483, 1086341312
    %v548 = vmin.bf16 %v484, 1086341312
    %v549 = vmin.bf16 %v485, 1086341312
    %v550 = vmin.bf16 %v486, 1086341312
    %v551 = vmin.bf16 %v487, 1086341312
    %v552 = vmin.bf16 %v488, 1086341312
    %v553 = vmin.bf16 %v489, 1086341312
    %v554 = vmin.bf16 %v490, 1086341312
    %v555 = vmin.bf16 %v491, 1086341312
    %v556 = vmin.bf16 %v492, 1086341312
    %v557 = vmin.bf16 %v493, 1086341312
    %v558 = vmin.bf16 %v494, 1086341312
    %v559 = vmin.bf16 %v495, 1086341312
    %v560 = vmin.bf16 %v496, 1086341312
    %v561 = vmin.bf16 %v497, 1086341312
    %v562 = vmin.bf16 %v498, 1086341312
    %v563 = vmin.bf16 %v499, 1086341312
    %v564 = vmin.bf16 %v500, 1086341312
    %v565 = vmin.bf16 %v501, 1086341312
    %v566 = vmin.bf16 %v502, 1086341312
    %v567 = vmin.bf16 %v503, 1086341312
    %v568 = vmin.bf16 %v504, 1086341312
    %v569 = vmin.bf16 %v505, 1086341312
    %v570 = vmin.bf16 %v506, 1086341312
    %v571 = vmin.bf16 %v507, 1086341312
    %v572 = vmin.bf16 %v508, 1086341312
    %v573 = vmin.bf16 %v509, 1086341312
    %v574 = vmin.bf16 %v510, 1086341312
    %v575 = vmin.bf16 %v511, 1086341312
    %v576 = vmin.bf16 %v512, 1086341312
    %v577 = vmin.bf16 %v513, 1086341312
    %v578 = vmin.bf16 %v514, 1086341312
    %v579 = vmin.bf16 %v515, 1086341312
    %v580 = vmin.bf16 %v516, 1086341312
    %v581 = vmin.bf16 %v517, 1086341312
    %v582 = vmin.bf16 %v518, 1086341312
    %v583 = vmin.bf16 %v519, 1086341312
    %v584 = vmin.bf16 %v520, 1086341312
    %v585 = vmin.bf16 %v521, 1086341312
    %v586 = vmin.bf16 %v522, 1086341312
    %v587 = vmin.bf16 %v523, 1086341312
    %v588 = vmin.bf16 %v524, 1086341312
    %v589 = vmin.bf16 %v525, 1086341312
    %v590 = vmin.bf16 %v526, 1086341312
    %v591 = vmin.bf16 %v527, 1086341312
    %v592 = vmin.bf16 %v528, 1086341312
    %v593 = vmin.bf16 %v529, 1086341312
    %v594 = vmin.bf16 %v530, 1086341312
    %v595 = vmin.bf16 %v531, 1086341312
    %v596 = vmin.bf16 %v532, 1086341312
    %v597 = vmin.bf16 %v533, 1086341312
    %v598 = vunpack.c.l.bf16 %v534
    %v599 = vunpack.c.l.bf16 %v535
    %v600 = vunpack.c.l.bf16 %v536
    %v601 = vunpack.c.l.bf16 %v537
    %v602 = vunpack.c.l.bf16 %v538
    %v603 = vunpack.c.l.bf16 %v539
    %v604 = vunpack.c.l.bf16 %v540
    %v605 = vunpack.c.l.bf16 %v541
    %v606 = vunpack.c.l.bf16 %v542
    %v607 = vunpack.c.l.bf16 %v543
    %v608 = vunpack.c.l.bf16 %v544
    %v609 = vunpack.c.l.bf16 %v545
    %v610 = vunpack.c.l.bf16 %v546
    %v611 = vunpack.c.l.bf16 %v547
    %v612 = vunpack.c.l.bf16 %v548
    %v613 = vunpack.c.l.bf16 %v549
    %v614 = vunpack.c.l.bf16 %v550
    %v615 = vunpack.c.l.bf16 %v551
    %v616 = vunpack.c.l.bf16 %v552
    %v617 = vunpack.c.l.bf16 %v553
    %v618 = vunpack.c.l.bf16 %v554
    %v619 = vunpack.c.l.bf16 %v555
    %v620 = vunpack.c.l.bf16 %v556
    %v621 = vunpack.c.l.bf16 %v557
    %v622 = vunpack.c.l.bf16 %v558
    %v623 = vunpack.c.l.bf16 %v559
    %v624 = vunpack.c.l.bf16 %v560
    %v625 = vunpack.c.l.bf16 %v561
    %v626 = vunpack.c.l.bf16 %v562
    %v627 = vunpack.c.l.bf16 %v563
    %v628 = vunpack.c.l.bf16 %v564
    %v629 = vunpack.c.l.bf16 %v565
    %v630 = vunpack.c.l.bf16 %v566
    %v631 = vunpack.c.l.bf16 %v567
    %v632 = vunpack.c.l.bf16 %v568
    %v633 = vunpack.c.l.bf16 %v569
    %v634 = vunpack.c.l.bf16 %v570
    %v635 = vunpack.c.l.bf16 %v571
    %v636 = vunpack.c.l.bf16 %v572
    %v637 = vunpack.c.l.bf16 %v573
    %v638 = vunpack.c.l.bf16 %v574
    %v639 = vunpack.c.l.bf16 %v575
    %v640 = vunpack.c.l.bf16 %v576
    %v641 = vunpack.c.l.bf16 %v577
    %v642 = vunpack.c.l.bf16 %v578
    %v643 = vunpack.c.l.bf16 %v579
    %v644 = vunpack.c.l.bf16 %v580
    %v645 = vunpack.c.l.bf16 %v581
    %v646 = vunpack.c.l.bf16 %v582
    %v647 = vunpack.c.l.bf16 %v583
    %v648 = vunpack.c.l.bf16 %v584
    %v649 = vunpack.c.l.bf16 %v585
    %v650 = vunpack.c.l.bf16 %v586
    %v651 = vunpack.c.l.bf16 %v587
    %v652 = vunpack.c.l.bf16 %v588
    %v653 = vunpack.c.l.bf16 %v589
    %v654 = vunpack.c.l.bf16 %v590
    %v655 = vunpack.c.l.bf16 %v591
    %v656 = vunpack.c.l.bf16 %v592
    %v657 = vunpack.c.l.bf16 %v593
    %v658 = vunpack.c.l.bf16 %v594
    %v659 = vunpack.c.l.bf16 %v595
    %v660 = vunpack.c.l.bf16 %v596
    %v661 = vunpack.c.l.bf16 %v597
    %vm662 = vcmask 523264
    %v663 = vsel %vm662, %v598, 0.0
    %v664 = vsel %vm662, %v599, 0.0
    %v665 = vadd.f32 %v663, %v664
    %v666 = vsel %vm662, %v600, 0.0
    %v667 = vadd.f32 %v665, %v666
    %v668 = vsel %vm662, %v601, 0.0
    %v669 = vadd.f32 %v667, %v668
    %v670 = vsel %vm662, %v602, 0.0
    %v671 = vadd.f32 %v669, %v670
    %v672 = vsel %vm662, %v603, 0.0
    %v673 = vadd.f32 %v671, %v672
    %v674 = vsel %vm662, %v604, 0.0
    %v675 = vadd.f32 %v673, %v674
    %v676 = vsel %vm662, %v605, 0.0
    %v677 = vadd.f32 %v675, %v676
    %v678 = vrot.slane %v677, 4
    %v679 = vadd.f32 %v677, %v678
    %v680 = vrot.slane %v679, 2
    %v681 = vadd.f32 %v679, %v680
    %v682 = vrot.slane %v681, 1
    %v683 = vadd.f32 %v681, %v682
    %v684 = vsel %vm662, %v606, 0.0
    %v685 = vsel %vm662, %v607, 0.0
    %v686 = vadd.f32 %v684, %v685
    %v687 = vsel %vm662, %v608, 0.0
    %v688 = vadd.f32 %v686, %v687
    %v689 = vsel %vm662, %v609, 0.0
    %v690 = vadd.f32 %v688, %v689
    %v691 = vsel %vm662, %v610, 0.0
    %v692 = vadd.f32 %v690, %v691
    %v693 = vsel %vm662, %v611, 0.0
    %v694 = vadd.f32 %v692, %v693
    %v695 = vsel %vm662, %v612, 0.0
    %v696 = vadd.f32 %v694, %v695
    %v697 = vsel %vm662, %v613, 0.0
    %v698 = vadd.f32 %v696, %v697
    %v699 = vrot.slane %v698, 4
    %v700 = vadd.f32 %v698, %v699
    %v701 = vrot.slane %v700, 2
    %v702 = vadd.f32 %v700, %v701
    %v703 = vrot.slane %v702, 1
    %v704 = vadd.f32 %v702, %v703
    %v705 = vsel %vm662, %v614, 0.0
    %v706 = vsel %vm662, %v615, 0.0
    %v707 = vadd.f32 %v705, %v706
    %v708 = vsel %vm662, %v616, 0.0
    %v709 = vadd.f32 %v707, %v708
    %v710 = vsel %vm662, %v617, 0.0
    %v711 = vadd.f32 %v709, %v710
    %v712 = vsel %vm662, %v618, 0.0
    %v713 = vadd.f32 %v711, %v712
    %v714 = vsel %vm662, %v619, 0.0
    %v715 = vadd.f32 %v713, %v714
    %v716 = vsel %vm662, %v620, 0.0
    %v717 = vadd.f32 %v715, %v716
    %v718 = vsel %vm662, %v621, 0.0
    %v719 = vadd.f32 %v717, %v718
    %v720 = vrot.slane %v719, 4
    %v721 = vadd.f32 %v719, %v720
    %v722 = vrot.slane %v721, 2
    %v723 = vadd.f32 %v721, %v722
    %v724 = vrot.slane %v723, 1
    %v725 = vadd.f32 %v723, %v724
    %v726 = vsel %vm662, %v622, 0.0
    %v727 = vsel %vm662, %v623, 0.0
    %v728 = vadd.f32 %v726, %v727
    %v729 = vsel %vm662, %v624, 0.0
    %v730 = vadd.f32 %v728, %v729
    %v731 = vsel %vm662, %v625, 0.0
    %v732 = vadd.f32 %v730, %v731
    %v733 = vsel %vm662, %v626, 0.0
    %v734 = vadd.f32 %v732, %v733
    %v735 = vsel %vm662, %v627, 0.0
    %v736 = vadd.f32 %v734, %v735
    %v737 = vsel %vm662, %v628, 0.0
    %v738 = vadd.f32 %v736, %v737
    %v739 = vsel %vm662, %v629, 0.0
    %v740 = vadd.f32 %v738, %v739
    %v741 = vrot.slane %v740, 4
    %v742 = vadd.f32 %v740, %v741
    %v743 = vrot.slane %v742, 2
    %v744 = vadd.f32 %v742, %v743
    %v745 = vrot.slane %v744, 1
    %v746 = vadd.f32 %v744, %v745
    %v747 = vsel %vm662, %v630, 0.0
    %v748 = vsel %vm662, %v631, 0.0
    %v749 = vadd.f32 %v747, %v748
    %v750 = vsel %vm662, %v632, 0.0
    %v751 = vadd.f32 %v749, %v750
    %v752 = vsel %vm662, %v633, 0.0
    %v753 = vadd.f32 %v751, %v752
    %v754 = vsel %vm662, %v634, 0.0
    %v755 = vadd.f32 %v753, %v754
    %v756 = vsel %vm662, %v635, 0.0
    %v757 = vadd.f32 %v755, %v756
    %v758 = vsel %vm662, %v636, 0.0
    %v759 = vadd.f32 %v757, %v758
    %v760 = vsel %vm662, %v637, 0.0
    %v761 = vadd.f32 %v759, %v760
    %v762 = vrot.slane %v761, 4
    %v763 = vadd.f32 %v761, %v762
    %v764 = vrot.slane %v763, 2
    %v765 = vadd.f32 %v763, %v764
    %v766 = vrot.slane %v765, 1
    %v767 = vadd.f32 %v765, %v766
    %v768 = vsel %vm662, %v638, 0.0
    %v769 = vsel %vm662, %v639, 0.0
    %v770 = vadd.f32 %v768, %v769
    %v771 = vsel %vm662, %v640, 0.0
    %v772 = vadd.f32 %v770, %v771
    %v773 = vsel %vm662, %v641, 0.0
    %v774 = vadd.f32 %v772, %v773
    %v775 = vsel %vm662, %v642, 0.0
    %v776 = vadd.f32 %v774, %v775
    %v777 = vsel %vm662, %v643, 0.0
    %v778 = vadd.f32 %v776, %v777
    %v779 = vsel %vm662, %v644, 0.0
    %v780 = vadd.f32 %v778, %v779
    %v781 = vsel %vm662, %v645, 0.0
    %v782 = vadd.f32 %v780, %v781
    %v783 = vrot.slane %v782, 4
    %v784 = vadd.f32 %v782, %v783
    %v785 = vrot.slane %v784, 2
    %v786 = vadd.f32 %v784, %v785
    %v787 = vrot.slane %v786, 1
    %v788 = vadd.f32 %v786, %v787
    %v789 = vsel %vm662, %v646, 0.0
    %v790 = vsel %vm662, %v647, 0.0
    %v791 = vadd.f32 %v789, %v790
    %v792 = vsel %vm662, %v648, 0.0
    %v793 = vadd.f32 %v791, %v792
    %v794 = vsel %vm662, %v649, 0.0
    %v795 = vadd.f32 %v793, %v794
    %v796 = vsel %vm662, %v650, 0.0
    %v797 = vadd.f32 %v795, %v796
    %v798 = vsel %vm662, %v651, 0.0
    %v799 = vadd.f32 %v797, %v798
    %v800 = vsel %vm662, %v652, 0.0
    %v801 = vadd.f32 %v799, %v800
    %v802 = vsel %vm662, %v653, 0.0
    %v803 = vadd.f32 %v801, %v802
    %v804 = vrot.slane %v803, 4
    %v805 = vadd.f32 %v803, %v804
    %v806 = vrot.slane %v805, 2
    %v807 = vadd.f32 %v805, %v806
    %v808 = vrot.slane %v807, 1
    %v809 = vadd.f32 %v807, %v808
    %v810 = vsel %vm662, %v654, 0.0
    %v811 = vsel %vm662, %v655, 0.0
    %v812 = vadd.f32 %v810, %v811
    %v813 = vsel %vm662, %v656, 0.0
    %v814 = vadd.f32 %v812, %v813
    %v815 = vsel %vm662, %v657, 0.0
    %v816 = vadd.f32 %v814, %v815
    %v817 = vsel %vm662, %v658, 0.0
    %v818 = vadd.f32 %v816, %v817
    %v819 = vsel %vm662, %v659, 0.0
    %v820 = vadd.f32 %v818, %v819
    %v821 = vsel %vm662, %v660, 0.0
    %v822 = vadd.f32 %v820, %v821
    %v823 = vsel %vm662, %v661, 0.0
    %v824 = vadd.f32 %v822, %v823
    %v825 = vrot.slane %v824, 4
    %v826 = vadd.f32 %v824, %v825
    %v827 = vrot.slane %v826, 2
    %v828 = vadd.f32 %v826, %v827
    %v829 = vrot.slane %v828, 1
    %v830 = vadd.f32 %v828, %v829
    %v831 = vrcp.pop 64.0
    %v832 = vmul.f32 %v683, %v831
    %v833 = vmul.f32 %v704, %v831
    %v834 = vmul.f32 %v725, %v831
    %v835 = vmul.f32 %v746, %v831
    %v836 = vmul.f32 %v767, %v831
    %v837 = vmul.f32 %v788, %v831
    %v838 = vmul.f32 %v809, %v831
    %v839 = vmul.f32 %v830, %v831
    %v840 = vld [vmem:[#allocation11] sm:$0xff]
    %v841 = vld [vmem:[#allocation11 + $0x8] sm:$0xff]
    %v842 = vld [vmem:[#allocation11 + $0x10] sm:$0xff]
    %v843 = vld [vmem:[#allocation11 + $0x18] sm:$0xff]
    %v844 = vld [vmem:[#allocation11 + $0x20] sm:$0xff]
    %v845 = vld [vmem:[#allocation11 + $0x28] sm:$0xff]
    %v846 = vld [vmem:[#allocation11 + $0x30] sm:$0xff]
    %v847 = vld [vmem:[#allocation11 + $0x38] sm:$0xff]
    %v848 = vld [vmem:[%s9] sm:$0x1]
    %v850 = vlaneseq
    %v851 = vshrl.u32 %v850, 7
    %v852 = vsub.s32 0, %v851
    %v853 = vrot.slane %v848, %v852
    %vm863 = vcmask 1041409
    %v864 = vsel %vm863, %v833, %v832
    %vm865 = vcmask 1042434
    %v866 = vsel %vm865, %v834, %v864
    %vm867 = vcmask 1043459
    %v868 = vsel %vm867, %v835, %v866
    %vm869 = vcmask 1044484
    %v870 = vsel %vm869, %v836, %v868
    %vm871 = vcmask 1045509
    %v872 = vsel %vm871, %v837, %v870
    %vm873 = vcmask 1046534
    %v874 = vsel %vm873, %v838, %v872
    %vm875 = vcmask 1047559
    %v876 = vsel %vm875, %v839, %v874
    %v877 = vsel %vm662, %v876, 0
    %879 = vmatprep.subr.mxu0 0.0
    %880 = vmatpush1.msra.mxu0 %v840
    %881 = vmatprep.subr.mxu0 0.0
    %882 = vmatpush1.msra.mxu0 %v841
    %883 = vmatprep.subr.mxu0 0.0
    %884 = vmatpush1.msra.mxu0 %v842
    %885 = vmatprep.subr.mxu0 0.0
    %886 = vmatpush1.msra.mxu0 %v843
    %887 = vmatprep.subr.mxu0 0.0
    %888 = vmatpush1.msra.mxu0 %v844
    %889 = vmatprep.subr.mxu0 0.0
    %890 = vmatpush1.msra.mxu0 %v845
    %891 = vmatprep.subr.mxu0 0.0
    %892 = vmatpush1.msra.mxu0 %v846
    %893 = vmatprep.subr.mxu0 0.0
    %894 = vmatpush1.msra.mxu0 %v847
    %895 = vmatprep.subr.mxu0 0.0
    %896 = vmatpush1.msra.mxu0 0.0
    %897 = vmatprep.subr.mxu0 0.0
    %898 = vmatpush1.msra.mxu0 0.0
    %899 = vmatprep.subr.mxu0 0.0
    %900 = vmatpush1.msra.mxu0 0.0
    %901 = vmatprep.subr.mxu0 0.0
    %902 = vmatpush1.msra.mxu0 0.0
    %903 = vmatprep.subr.mxu0 0.0
    %904 = vmatpush1.msra.mxu0 0.0
    %905 = vmatprep.subr.mxu0 0.0
    %906 = vmatpush1.msra.mxu0 0.0
    %907 = vmatprep.subr.mxu0 0.0
    %908 = vmatpush1.msra.mxu0 0.0
    %909 = vmatprep.subr.mxu0 0.0
    %910 = vmatpush1.msra.mxu0 0.0
    %911 = vmatprep.subr.mxu0 0.0
    %912 = vmatpush1.msra.mxu0 0.0
    %913 = vmatprep.subr.mxu0 0.0
    %914 = vmatpush1.msra.mxu0 0.0
    %915 = vmatprep.subr.mxu0 0.0
    %916 = vmatpush1.msra.mxu0 0.0
    %917 = vmatprep.subr.mxu0 0.0
    %918 = vmatpush1.msra.mxu0 0.0
    %919 = vmatprep.subr.mxu0 0.0
    %920 = vmatpush1.msra.mxu0 0.0
    %921 = vmatprep.subr.mxu0 0.0
    %922 = vmatpush1.msra.mxu0 0.0
    %923 = vmatprep.subr.mxu0 0.0
    %924 = vmatpush1.msra.mxu0 0.0
    %925 = vmatprep.subr.mxu0 0.0
    %926 = vmatpush1.msra.mxu0 0.0
    %927 = vmatprep.subr.mxu0 0.0
    %928 = vmatpush1.msra.mxu0 0.0
    %929 = vmatprep.subr.mxu0 0.0
    %930 = vmatpush1.msra.mxu0 0.0
    %931 = vmatprep.subr.mxu0 0.0
    %932 = vmatpush1.msra.mxu0 0.0
    %933 = vmatprep.subr.mxu0 0.0
    %934 = vmatpush1.msra.mxu0 0.0
    %935 = vmatprep.subr.mxu0 0.0
    %936 = vmatpush1.msra.mxu0 0.0
    %937 = vmatprep.subr.mxu0 0.0
    %938 = vmatpush1.msra.mxu0 0.0
    %939 = vmatprep.subr.mxu0 0.0
    %940 = vmatpush1.msra.mxu0 0.0
    %941 = vmatprep.subr.mxu0 0.0
    %942 = vmatpush1.msra.mxu0 0.0
    %943 = vmatprep.mubr.f32.mxu0 0.0
    %944 = vmatmul.mubr.f32.gmra.mrb[0].mxu0 %v877
    %v945 = vpop.f32.mrb[0].mxu0
    %v946 = vadd.f32 %v853, %v945
    %v947 = vpop.f32.mrb[0].mxu0
    %948 = vdwg.mxu0
    %949 = vst [vmem:[#allocation13] sm:$0xff] %v946
    // Predicated region
    $region66: #{tpu_custom_call.1} parent=1 // pred_check
      _
    $region67: #{tpu_custom_call.1} parent=1 // pred_check_branch
      %951 = sbr.rel (0) target = $region69
    $region68: #{tpu_custom_call.1} parent=1 // pred_region
      %s953 = ssub.s32 128, 128
      %954 = vsyncadd [#allocation4], %s953
      %s956 = sshll.u32 [#allocation13], 4
      %s957 = int_to_ptr.vmem [resolvable:$true] %s956
      %959 = dma.vmem_to_hbm [thread:$0]  %s957, 128, %s10, [#allocation4]
    $region69: #{tpu_custom_call.1} parent=1 // pred_fallthru
      _
    // Predicated region
    $region70: #{tpu_custom_call.1} parent=1 // pred_check
      _
    $region71: #{tpu_custom_call.1} parent=1 // pred_check_branch
      %961 = sbr.rel (0) target = $region73
    $region72: #{tpu_custom_call.1} parent=1 // pred_region
      %s963 = ssub.s32 128, 128
      %964 = vsyncadd [#allocation15], %s963
      %s966 = sshll.u32 [#allocation14], 4
      %s967 = int_to_ptr.vmem [resolvable:$true] %s966
      %969 = dma.vmem_to_hbm [thread:$0]  %s967, 128, %s11, [#allocation15]
    $region73: #{tpu_custom_call.1} parent=1 // pred_fallthru
      _
    // Predicated region
    $region74: #{tpu_custom_call.1} parent=1 // pred_check
      _
    $region75: #{tpu_custom_call.1} parent=1 // pred_check_branch
      %971 = sbr.rel (0) target = $region77
    $region76: #{tpu_custom_call.1} parent=1 // pred_region
      %972 = dma.done [#allocation4], 128
    $region77: #{tpu_custom_call.1} parent=1 // pred_fallthru
      _
    // Predicated region
    $region78: #{tpu_custom_call.1} parent=1 // pred_check
      _
    $region79: #{tpu_custom_call.1} parent=1 // pred_check_branch
      %974 = sbr.rel (0) target = $region81
    $region80: #{tpu_custom_call.1} parent=1 // pred_region
      %975 = dma.done [#allocation15], 128
    $region81: #{tpu_custom_call.1} parent=1 // pred_fallthru
      _
    %976 = vsyncpa [#allocation3], 1
    %977 = vsyncpa [#allocation6], 1
    %978 = vsyncpa [#allocation9], 1
    %979 = vsyncpa [#allocation12], 1
    %980 = vsyncpa [#allocation4], 1
    %981 = vsyncpa [#allocation15], 1

</llo_original>
